<compile_context>
chip_gen: v7x
topology: tpu7x:2x2x1
jax: 0.10.0
libtpu: 0.0.40
codegen_flags: <defaults>
</compile_context>

<pallas_src>
import functools

import jax
import jax.numpy as jnp
from jax.experimental import pallas as pl
from jax.experimental.pallas import tpu as pltpu

LANE = 128     # TPU lane width  (last-dim alignment)
SUBLANE = 8    # f32 sublane height (second-to-last-dim alignment)


def _round_up(x, m):
    return ((x + m - 1) // m) * m


# ---------------------------------------------------------------------------
# Kernel
# ---------------------------------------------------------------------------
def make_lmn_kernel(n_hidden_layers: int, compute_dtype):
    """LMN-A forward step. Weights arrive pre-transposed to (in, out) and
    zero-padded to lane multiples, so the kernel is pure `act @ W` MXU work
    with no in-kernel transposes or slicing."""

    def kernel(*refs):
        idx = 0
        x = refs[idx][...]; idx += 1          # (TB, in_pad)   compute_dtype
        hm = refs[idx][...]; idx += 1         # (TB, mem_pad)  compute_dtype

        # First functional layer: concat(x, h_m) @ W1 == x @ W1x + h_m @ W1m
        w1x = refs[idx][...]; idx += 1        # (in_pad,  h1_pad)
        w1m = refs[idx][...]; idx += 1        # (mem_pad, h1_pad)
        b1 = refs[idx][...]; idx += 1         # (1, h1_pad)  f32
        h = jnp.tanh(
            jnp.dot(x, w1x, preferred_element_type=jnp.float32)
            + jnp.dot(hm, w1m, preferred_element_type=jnp.float32)
            + b1)                             # tanh in f32 (v5e-safe)
        hc = h.astype(compute_dtype)

        # Remaining hidden layers.
        for _ in range(n_hidden_layers - 1):
            w = refs[idx][...]; idx += 1      # (h_{k-1}_pad, h_k_pad)
            b = refs[idx][...]; idx += 1      # (1, h_k_pad)
            h = jnp.tanh(jnp.dot(hc, w, preferred_element_type=jnp.float32) + b)
            hc = h.astype(compute_dtype)

        wo = refs[idx][...]; idx += 1         # (h_last_pad, out_pad)
        bo = refs[idx][...]; idx += 1         # (1, out_pad)
        wm = refs[idx][...]; idx += 1         # (mem_pad, mem_pad)
        bm = refs[idx][...]; idx += 1         # (1, mem_pad)
        wf = refs[idx][...]; idx += 1         # (h_last_pad, mem_pad)
        bf = refs[idx][...]; idx += 1         # (1, mem_pad)

        hm_new_ref = refs[idx]; idx += 1      # out: (TB, mem_pad) f32
        out_ref = refs[idx]; idx += 1         # out: (TB, out_pad) f32

        out_ref[...] = (
            jnp.dot(hc, wo, preferred_element_type=jnp.float32) + bo
        ).astype(out_ref.dtype)
        hm_new_ref[...] = (
            jnp.dot(hm, wm, preferred_element_type=jnp.float32) + bm
            + jnp.dot(hc, wf, preferred_element_type=jnp.float32) + bf
        ).astype(hm_new_ref.dtype)

    return kernel


# ---------------------------------------------------------------------------
# One-time parameter preparation (transpose + split + pad + cast)
# ---------------------------------------------------------------------------
def prepare_params(params, *, input_size, hidden_sizes, output_size,
                   memory_size, compute_dtype=jnp.bfloat16):
    assert len(hidden_sizes) >= 1, "LMN functional MLP needs >=1 hidden layer"

    in_pad = _round_up(input_size, LANE)
    mem_pad = _round_up(memory_size, LANE)
    out_pad = _round_up(output_size, LANE)
    hid_pad = [_round_up(h, LANE) for h in hidden_sizes]

    def w_prep(w, in_d, in_d_pad, out_d, out_d_pad):
        # PyTorch layout (out, in) -> (in, out), zero-pad, cast to MXU dtype.
        wt = jnp.zeros((in_d_pad, out_d_pad), jnp.float32)
        wt = wt.at[:in_d, :out_d].set(jnp.asarray(w, jnp.float32).T)
        return wt.astype(compute_dtype)

    def b_prep(b, out_d, out_d_pad):
        bp = jnp.zeros((1, out_d_pad), jnp.float32)
        return bp.at[0, :out_d].set(jnp.asarray(b, jnp.float32))

    w1 = params["func_w"][0]                  # (H1, input_size + memory_size)
    prep = {
        "w1x": w_prep(w1[:, :input_size], input_size, in_pad,
                      hidden_sizes[0], hid_pad[0]),
        "w1m": w_prep(w1[:, input_size:], memory_size, mem_pad,
                      hidden_sizes[0], hid_pad[0]),
        "b1": b_prep(params["func_b"][0], hidden_sizes[0], hid_pad[0]),
        "hidden": [],
        "wo": w_prep(params["out_w"], hidden_sizes[-1], hid_pad[-1],
                     output_size, out_pad),
        "bo": b_prep(params["out_b"], output_size, out_pad),
        "wm": w_prep(params["mem_w"], memory_size, mem_pad,
                     memory_size, mem_pad),
        "bm": b_prep(params["mem_b"], memory_size, mem_pad),
        "wf": w_prep(params["fun_w"], hidden_sizes[-1], hid_pad[-1],
                     memory_size, mem_pad),
        "bf": b_prep(params["fun_b"], memory_size, mem_pad),
        "dims": dict(in_pad=in_pad, mem_pad=mem_pad, out_pad=out_pad,
                     hid_pad=hid_pad, compute_dtype=compute_dtype),
    }
    for k in range(1, len(hidden_sizes)):
        prep["hidden"].append((
            w_prep(params["func_w"][k], hidden_sizes[k - 1], hid_pad[k - 1],
                   hidden_sizes[k], hid_pad[k]),
            b_prep(params["func_b"][k], hidden_sizes[k], hid_pad[k]),
        ))
    return prep


# ---------------------------------------------------------------------------
# Forward wrapper
# ---------------------------------------------------------------------------
def lmn_forward(x, h_m, prep, *, output_size, memory_size, batch_tile=256):
    """One LMN-A forward step as a single batch-gridded Pallas call."""
    dims = prep["dims"]
    in_pad, mem_pad, out_pad = dims["in_pad"], dims["mem_pad"], dims["out_pad"]
    compute_dtype = dims["compute_dtype"]
    n_hidden = len(dims["hid_pad"])

    batch = x.shape[0]
    tb = min(batch_tile, _round_up(batch, SUBLANE))
    tb = _round_up(tb, SUBLANE)
    b_pad = _round_up(batch, tb)
    grid = (b_pad // tb,)

    # Zero-pad activations to aligned tiles; cast to MXU compute dtype.
    xp = jnp.zeros((b_pad, in_pad), jnp.float32).at[:batch, :x.shape[1]].set(x)
    mp = jnp.zeros((b_pad, mem_pad), jnp.float32).at[:batch, :memory_size].set(h_m)
    xp = xp.astype(compute_dtype)
    mp = mp.astype(compute_dtype)

    weights = [prep["w1x"], prep["w1m"], prep["b1"]]
    for w, b in prep["hidden"]:
        weights += [w, b]
    weights += [prep["wo"], prep["bo"], prep["wm"], prep["bm"],
                prep["wf"], prep["bf"]]

    def act_spec(width):
        return pl.BlockSpec((tb, width), lambda i: (i, 0))

    def resident_spec(arr):
        # Full-array block with constant index -> stays VMEM-resident across
        # the batch grid (no per-step re-DMA of weights).
        return pl.BlockSpec(arr.shape, lambda i: (0, 0))

    in_specs = [act_spec(in_pad), act_spec(mem_pad)] + [
        resident_spec(w) for w in weights]
    out_specs = (act_spec(mem_pad), act_spec(out_pad))
    out_shape = (jax.ShapeDtypeStruct((b_pad, mem_pad), jnp.float32),
                 jax.ShapeDtypeStruct((b_pad, out_pad), jnp.float32))

    # VMEM budget: resident weights (double-buffered alloc) + pipelined
    # activation/output tiles.  Stays well under v7x's 64 MiB for these sizes.
    weight_bytes = sum(int(w.size) * w.dtype.itemsize for w in weights)
    act_bytes = 2 * tb * (in_pad + mem_pad) * jnp.dtype(compute_dtype).itemsize
    out_bytes = 2 * tb * (mem_pad + out_pad) * 4
    vmem_limit = int(max(32 * 1024 * 1024,
                         2 * weight_bytes + act_bytes + out_bytes + (2 << 20)))

    hm_new_p, out_p = pl.pallas_call(
        make_lmn_kernel(n_hidden, compute_dtype),
        out_shape=out_shape,
        grid_spec=pltpu.PrefetchScalarGridSpec(
            num_scalar_prefetch=0, grid=grid,
            in_specs=in_specs, out_specs=out_specs),
        compiler_params=pltpu.CompilerParams(
            dimension_semantics=("parallel",),
            vmem_limit_bytes=vmem_limit),
    )(xp, mp, *weights)

    return hm_new_p[:batch, :memory_size], out_p[:batch, :output_size]


# ---------------------------------------------------------------------------
# Parameter init mirroring the PyTorch module
# ---------------------------------------------------------------------------
def init_params(key, *, input_size, hidden_sizes, output_size, memory_size,
                orthogonal=True):
    """nn.Linear default: U(-1/sqrt(fan_in), 1/sqrt(fan_in)) for weight & bias.
    linear_memory.weight gets an orthogonal init (as in the PyTorch module)."""

    def linear_init(k, out_f, in_f):
        kw, kb = jax.random.split(k)
        bound = 1.0 / jnp.sqrt(in_f)
        w = jax.random.uniform(kw, (out_f, in_f), jnp.float32, -bound, bound)
        b = jax.random.uniform(kb, (out_f,), jnp.float32, -bound, bound)
        return w, b

    keys = jax.random.split(key, len(hidden_sizes) + 4)
    params = {"func_w": [], "func_b": []}

    in_f = input_size + memory_size
    for i, h in enumerate(hidden_sizes):
        w, b = linear_init(keys[i], h, in_f)
        params["func_w"].append(w)
        params["func_b"].append(b)
        in_f = h

    params["out_w"], params["out_b"] = linear_init(
        keys[len(hidden_sizes)], output_size, hidden_sizes[-1])

    wm, bm = linear_init(keys[len(hidden_sizes) + 1], memory_size, memory_size)
    if orthogonal:
        g = jax.random.normal(keys[len(hidden_sizes) + 3],
                              (memory_size, memory_size), jnp.float32)
        q, r = jnp.linalg.qr(g)
        wm = q * jnp.sign(jnp.diag(r))[None, :]
    params["mem_w"], params["mem_b"] = wm, bm

    params["fun_w"], params["fun_b"] = linear_init(
        keys[len(hidden_sizes) + 2], memory_size, hidden_sizes[-1])
    return params


# ---------------------------------------------------------------------------
# Pure-JAX references
# ---------------------------------------------------------------------------
def lmn_reference(x, h_m, params, *, compute_dtype=jnp.float32):
    """Reference matching the kernel's mixed precision when compute_dtype is
    bf16 (bf16 operands, f32 accumulation, f32 tanh)."""
    cd = compute_dtype

    def mm(a, w):
        return jnp.dot(a.astype(cd), jnp.asarray(w).astype(cd).T,
                       preferred_element_type=jnp.float32)

    h = jnp.concatenate([x, h_m], axis=1)
    for w, b in zip(params["func_w"], params["func_b"]):
        h = jnp.tanh(mm(h, w) + b)
    out = mm(h, params["out_w"]) + params["out_b"]
    h_m_new = (mm(h_m, params["mem_w"]) + params["mem_b"]
               + mm(h, params["fun_w"]) + params["fun_b"])
    return h_m_new, out


if __name__ == "__main__":
    # Small shapes consistent with the module's forward signature.
    batch = 2
    input_size = 4
    hidden_sizes = [32]
    output_size = 8
    memory_size = 16

    key = jax.random.PRNGKey(0)
    k_params, k_x, k_m = jax.random.split(key, 3)

    params = init_params(
        k_params, input_size=input_size, hidden_sizes=hidden_sizes,
        output_size=output_size, memory_size=memory_size, orthogonal=True)

    x = jax.random.normal(k_x, (batch, input_size), jnp.float32)
    h_m = jax.random.normal(k_m, (batch, memory_size), jnp.float32)

    compute_dtype = jnp.bfloat16
    prep = prepare_params(
        params, input_size=input_size, hidden_sizes=hidden_sizes,
        output_size=output_size, memory_size=memory_size,
        compute_dtype=compute_dtype)

    fwd = functools.partial(lmn_forward, output_size=output_size,
                            memory_size=memory_size)

    h_m_new, out = fwd(x, h_m, prep)
    jax.block_until_ready((h_m_new, out))

    assert h_m_new.shape == (batch, memory_size)
    assert out.shape == (batch, output_size)

    # Check against a precision-matched (bf16 operands, f32 accum) reference.
    h_ref_bf, out_ref_bf = lmn_reference(x, h_m, params,
                                         compute_dtype=compute_dtype)
    assert jnp.allclose(h_m_new, h_ref_bf, atol=2e-3, rtol=2e-3)
    assert jnp.allclose(out, out_ref_bf, atol=2e-3, rtol=2e-3)

    # Sanity check against the pure f32 reference (loose tol for bf16 weights).
    h_ref, out_ref = lmn_reference(x, h_m, params, compute_dtype=jnp.float32)
    assert jnp.allclose(h_m_new, h_ref, atol=5e-2, rtol=5e-2)
    assert jnp.allclose(out, out_ref, atol=5e-2, rtol=5e-2)

    print("KERNEL_OK")
</pallas_src>

<mosaic_0001>
module attributes {stable_mosaic.version = 11 : i64} {
  func.func @kernel(%arg0: i32, %arg1: memref<8x128xbf16, #tpu.memory_space<vmem>>, %arg2: memref<8x128xbf16, #tpu.memory_space<vmem>>, %arg3: memref<128x128xbf16, #tpu.memory_space<vmem>>, %arg4: memref<128x128xbf16, #tpu.memory_space<vmem>>, %arg5: memref<1x128xf32, #tpu.memory_space<vmem>>, %arg6: memref<128x128xbf16, #tpu.memory_space<vmem>>, %arg7: memref<1x128xf32, #tpu.memory_space<vmem>>, %arg8: memref<128x128xbf16, #tpu.memory_space<vmem>>, %arg9: memref<1x128xf32, #tpu.memory_space<vmem>>, %arg10: memref<128x128xbf16, #tpu.memory_space<vmem>>, %arg11: memref<1x128xf32, #tpu.memory_space<vmem>>, %arg12: memref<8x128xf32, #tpu.memory_space<vmem>>, %arg13: memref<8x128xf32, #tpu.memory_space<vmem>>) attributes {dimension_semantics = [#tpu.dimension_semantics<parallel>], iteration_bounds = array<i64: 1>, scalar_prefetch = 0 : i64, scratch_operands = 0 : i64, tpu.core_type = #tpu.core_type<tc>, window_params = [{transform_indices = @transform_0, window_bounds = array<i64: 8, 128>}, {transform_indices = @transform_1, window_bounds = array<i64: 8, 128>}, {pipeline_mode = #tpu.pipeline_mode<synchronous>, transform_indices = @transform_2, window_bounds = array<i64: 128, 128>}, {pipeline_mode = #tpu.pipeline_mode<synchronous>, transform_indices = @transform_3, window_bounds = array<i64: 128, 128>}, {pipeline_mode = #tpu.pipeline_mode<synchronous>, transform_indices = @transform_4, window_bounds = array<i64: 1, 128>}, {pipeline_mode = #tpu.pipeline_mode<synchronous>, transform_indices = @transform_5, window_bounds = array<i64: 128, 128>}, {pipeline_mode = #tpu.pipeline_mode<synchronous>, transform_indices = @transform_6, window_bounds = array<i64: 1, 128>}, {pipeline_mode = #tpu.pipeline_mode<synchronous>, transform_indices = @transform_7, window_bounds = array<i64: 128, 128>}, {pipeline_mode = #tpu.pipeline_mode<synchronous>, transform_indices = @transform_8, window_bounds = array<i64: 1, 128>}, {pipeline_mode = #tpu.pipeline_mode<synchronous>, transform_indices = @transform_9, window_bounds = array<i64: 128, 128>}, {pipeline_mode = #tpu.pipeline_mode<synchronous>, transform_indices = @transform_10, window_bounds = array<i64: 1, 128>}, {transform_indices = @transform_11, window_bounds = array<i64: 8, 128>}, {transform_indices = @transform_12, window_bounds = array<i64: 8, 128>}]} {
    %c0 = arith.constant 0 : index
    %c0_0 = arith.constant 0 : index
    %0 = vector.load %arg1[%c0, %c0_0] : memref<8x128xbf16, #tpu.memory_space<vmem>>, vector<8x128xbf16>
    %c0_1 = arith.constant 0 : index
    %c0_2 = arith.constant 0 : index
    %1 = vector.load %arg2[%c0_1, %c0_2] : memref<8x128xbf16, #tpu.memory_space<vmem>>, vector<8x128xbf16>
    %c0_3 = arith.constant 0 : index
    %c0_4 = arith.constant 0 : index
    %2 = vector.load %arg3[%c0_3, %c0_4] : memref<128x128xbf16, #tpu.memory_space<vmem>>, vector<128x128xbf16>
    %c0_5 = arith.constant 0 : index
    %c0_6 = arith.constant 0 : index
    %3 = vector.load %arg4[%c0_5, %c0_6] : memref<128x128xbf16, #tpu.memory_space<vmem>>, vector<128x128xbf16>
    %c0_7 = arith.constant 0 : index
    %c0_8 = arith.constant 0 : index
    %4 = vector.load %arg5[%c0_7, %c0_8] : memref<1x128xf32, #tpu.memory_space<vmem>>, vector<1x128xf32>
    %cst = arith.constant dense<0.000000e+00> : vector<8x128xf32>
    %5 = tpu.matmul %0, %2, %cst {dimension_numbers = #tpu.dot_dimension_numbers<[1], [0], [0], [1], [0, 0, 1, 1], [], []>} : vector<8x128xbf16>, vector<128x128xbf16>, vector<8x128xf32> -> vector<8x128xf32>
    %cst_9 = arith.constant dense<0.000000e+00> : vector<8x128xf32>
    %6 = tpu.matmul %1, %3, %cst_9 {dimension_numbers = #tpu.dot_dimension_numbers<[1], [0], [0], [1], [0, 0, 1, 1], [], []>} : vector<8x128xbf16>, vector<128x128xbf16>, vector<8x128xf32> -> vector<8x128xf32>
    %7 = arith.addf %5, %6 : vector<8x128xf32>
    %8 = vector.broadcast %4 : vector<1x128xf32> to vector<8x128xf32>
    %9 = arith.addf %7, %8 : vector<8x128xf32>
    %10 = math.tanh %9 : vector<8x128xf32>
    %11 = arith.truncf %10 : vector<8x128xf32> to vector<8x128xbf16>
    %c0_10 = arith.constant 0 : index
    %c0_11 = arith.constant 0 : index
    %12 = vector.load %arg6[%c0_10, %c0_11] : memref<128x128xbf16, #tpu.memory_space<vmem>>, vector<128x128xbf16>
    %c0_12 = arith.constant 0 : index
    %c0_13 = arith.constant 0 : index
    %13 = vector.load %arg7[%c0_12, %c0_13] : memref<1x128xf32, #tpu.memory_space<vmem>>, vector<1x128xf32>
    %c0_14 = arith.constant 0 : index
    %c0_15 = arith.constant 0 : index
    %14 = vector.load %arg8[%c0_14, %c0_15] : memref<128x128xbf16, #tpu.memory_space<vmem>>, vector<128x128xbf16>
    %c0_16 = arith.constant 0 : index
    %c0_17 = arith.constant 0 : index
    %15 = vector.load %arg9[%c0_16, %c0_17] : memref<1x128xf32, #tpu.memory_space<vmem>>, vector<1x128xf32>
    %c0_18 = arith.constant 0 : index
    %c0_19 = arith.constant 0 : index
    %16 = vector.load %arg10[%c0_18, %c0_19] : memref<128x128xbf16, #tpu.memory_space<vmem>>, vector<128x128xbf16>
    %c0_20 = arith.constant 0 : index
    %c0_21 = arith.constant 0 : index
    %17 = vector.load %arg11[%c0_20, %c0_21] : memref<1x128xf32, #tpu.memory_space<vmem>>, vector<1x128xf32>
    %cst_22 = arith.constant dense<0.000000e+00> : vector<8x128xf32>
    %18 = tpu.matmul %11, %12, %cst_22 {dimension_numbers = #tpu.dot_dimension_numbers<[1], [0], [0], [1], [0, 0, 1, 1], [], []>} : vector<8x128xbf16>, vector<128x128xbf16>, vector<8x128xf32> -> vector<8x128xf32>
    %19 = vector.broadcast %13 : vector<1x128xf32> to vector<8x128xf32>
    %20 = arith.addf %18, %19 : vector<8x128xf32>
    %c0_23 = arith.constant 0 : index
    %c0_24 = arith.constant 0 : index
    %21 = vector.load %arg13[%c0_23, %c0_24] : memref<8x128xf32, #tpu.memory_space<vmem>>, vector<8x128xf32>
    tpu.vector_store %arg13[%c0_23, %c0_24], %20 {strides = array<i32>} : memref<8x128xf32, #tpu.memory_space<vmem>>, vector<8x128xf32>,
    %cst_25 = arith.constant dense<0.000000e+00> : vector<8x128xf32>
    %22 = tpu.matmul %1, %14, %cst_25 {dimension_numbers = #tpu.dot_dimension_numbers<[1], [0], [0], [1], [0, 0, 1, 1], [], []>} : vector<8x128xbf16>, vector<128x128xbf16>, vector<8x128xf32> -> vector<8x128xf32>
    %23 = vector.broadcast %15 : vector<1x128xf32> to vector<8x128xf32>
    %24 = arith.addf %22, %23 : vector<8x128xf32>
    %cst_26 = arith.constant dense<0.000000e+00> : vector<8x128xf32>
    %25 = tpu.matmul %11, %16, %cst_26 {dimension_numbers = #tpu.dot_dimension_numbers<[1], [0], [0], [1], [0, 0, 1, 1], [], []>} : vector<8x128xbf16>, vector<128x128xbf16>, vector<8x128xf32> -> vector<8x128xf32>
    %26 = arith.addf %24, %25 : vector<8x128xf32>
    %27 = vector.broadcast %17 : vector<1x128xf32> to vector<8x128xf32>
    %28 = arith.addf %26, %27 : vector<8x128xf32>
    %c0_27 = arith.constant 0 : index
    %c0_28 = arith.constant 0 : index
    %29 = vector.load %arg12[%c0_27, %c0_28] : memref<8x128xf32, #tpu.memory_space<vmem>>, vector<8x128xf32>
    tpu.vector_store %arg12[%c0_27, %c0_28], %28 {strides = array<i32>} : memref<8x128xf32, #tpu.memory_space<vmem>>, vector<8x128xf32>,
    return
  }
  func.func @transform_0(%arg0: i32) -> (i32, i32) {
    %c0_i32 = arith.constant 0 : i32
    %c0_i32_0 = arith.constant 0 : i32
    return %arg0, %c0_i32 : i32, i32
  }
  func.func @transform_1(%arg0: i32) -> (i32, i32) {
    %c0_i32 = arith.constant 0 : i32
    %c0_i32_0 = arith.constant 0 : i32
    return %arg0, %c0_i32 : i32, i32
  }
  func.func @transform_2(%arg0: i32) -> (i32, i32) {
    %c0_i32 = arith.constant 0 : i32
    %c0_i32_0 = arith.constant 0 : i32
    %c0_i32_1 = arith.constant 0 : i32
    return %c0_i32, %c0_i32_0 : i32, i32
  }
  func.func @transform_3(%arg0: i32) -> (i32, i32) {
    %c0_i32 = arith.constant 0 : i32
    %c0_i32_0 = arith.constant 0 : i32
    %c0_i32_1 = arith.constant 0 : i32
    return %c0_i32, %c0_i32_0 : i32, i32
  }
  func.func @transform_4(%arg0: i32) -> (i32, i32) {
    %c0_i32 = arith.constant 0 : i32
    %c0_i32_0 = arith.constant 0 : i32
    %c0_i32_1 = arith.constant 0 : i32
    return %c0_i32, %c0_i32_0 : i32, i32
  }
  func.func @transform_5(%arg0: i32) -> (i32, i32) {
    %c0_i32 = arith.constant 0 : i32
    %c0_i32_0 = arith.constant 0 : i32
    %c0_i32_1 = arith.constant 0 : i32
    return %c0_i32, %c0_i32_0 : i32, i32
  }
  func.func @transform_6(%arg0: i32) -> (i32, i32) {
    %c0_i32 = arith.constant 0 : i32
    %c0_i32_0 = arith.constant 0 : i32
    %c0_i32_1 = arith.constant 0 : i32
    return %c0_i32, %c0_i32_0 : i32, i32
  }
  func.func @transform_7(%arg0: i32) -> (i32, i32) {
    %c0_i32 = arith.constant 0 : i32
    %c0_i32_0 = arith.constant 0 : i32
    %c0_i32_1 = arith.constant 0 : i32
    return %c0_i32, %c0_i32_0 : i32, i32
  }
  func.func @transform_8(%arg0: i32) -> (i32, i32) {
    %c0_i32 = arith.constant 0 : i32
    %c0_i32_0 = arith.constant 0 : i32
    %c0_i32_1 = arith.constant 0 : i32
    return %c0_i32, %c0_i32_0 : i32, i32
  }
  func.func @transform_9(%arg0: i32) -> (i32, i32) {
    %c0_i32 = arith.constant 0 : i32
    %c0_i32_0 = arith.constant 0 : i32
    %c0_i32_1 = arith.constant 0 : i32
    return %c0_i32, %c0_i32_0 : i32, i32
  }
  func.func @transform_10(%arg0: i32) -> (i32, i32) {
    %c0_i32 = arith.constant 0 : i32
    %c0_i32_0 = arith.constant 0 : i32
    %c0_i32_1 = arith.constant 0 : i32
    return %c0_i32, %c0_i32_0 : i32, i32
  }
  func.func @transform_11(%arg0: i32) -> (i32, i32) {
    %c0_i32 = arith.constant 0 : i32
    %c0_i32_0 = arith.constant 0 : i32
    return %arg0, %c0_i32 : i32, i32
  }
  func.func @transform_12(%arg0: i32) -> (i32, i32) {
    %c0_i32 = arith.constant 0 : i32
    %c0_i32_0 = arith.constant 0 : i32
    return %arg0, %c0_i32 : i32, i32
  }
}

</mosaic_0001>

<llo_original>
// kernel: tpu_custom_call.1
$region0: #{tpu_custom_call.1}
  #allocation0 [shape = 'u32[]', space=smem, size = 0x4, offset = 0x4, fixed_abs, tag = 'smem constant byte address 0x4 - core index']
  #allocation1 [shape = 'u32[144,128]{1,0:T(1,128)}', space=vmem, size = 0x12000, scoped, tag = 'internal scratch']
  %s0 = inlined_call_operand.hbm [shape: bf16[8,128], index: 0, kind: input, shape index: {}]
  %s1 = inlined_call_operand.hbm [shape: bf16[8,128], index: 1, kind: input, shape index: {}]
  %s2 = inlined_call_operand.hbm [shape: bf16[128,128], index: 2, kind: input, shape index: {}]
  %s3 = inlined_call_operand.hbm [shape: bf16[128,128], index: 3, kind: input, shape index: {}]
  %s4 = inlined_call_operand.vmem [shape: f32[1,128], index: 4, kind: input, shape index: {}]
  %s5 = inlined_call_operand.hbm [shape: bf16[128,128], index: 5, kind: input, shape index: {}]
  %s6 = inlined_call_operand.vmem [shape: f32[1,128], index: 6, kind: input, shape index: {}]
  %s7 = inlined_call_operand.hbm [shape: bf16[128,128], index: 7, kind: input, shape index: {}]
  %s8 = inlined_call_operand.vmem [shape: f32[1,128], index: 8, kind: input, shape index: {}]
  %s9 = inlined_call_operand.hbm [shape: bf16[128,128], index: 9, kind: input, shape index: {}]
  %s10 = inlined_call_operand.vmem [shape: f32[1,128], index: 10, kind: input, shape index: {}]
  %s11 = inlined_call_operand.hbm [shape: f32[8,128], index: 11, kind: output, shape index: {0}]
  %s12 = inlined_call_operand.hbm [shape: f32[8,128], index: 12, kind: output, shape index: {1}]
  %13 = xla_tuple %s11, %s12
  %s14 = sld [smem:[#allocation0]]
  $region90: #{tpu_custom_call.1} parent=0
    _
  %s16 = ssub.s32 1, %s14
  %s17 = scalar_select 0, %s16, %s14
  $region1: #{tpu_custom_call.1} parent=0
    #allocation2 [shape = 'u8[2048]{0}', space=vmem, size = 0x800, scoped, tag = 'input window, operand 0, single buffered']
    #allocation3 [shape = 's32[1]{0}', space=sflag, size = 0x4, scoped, tag = 'scoped memory for tpu_custom_call.1']
    #allocation4 [shape = 's32[1]{0}', space=sflag, size = 0x4, scoped, tag = 'scoped memory for tpu_custom_call.1']
    #allocation5 [shape = 'u8[2048]{0}', space=vmem, size = 0x800, scoped, tag = 'input window, operand 1, single buffered']
    #allocation6 [shape = 's32[1]{0}', space=sflag, size = 0x4, scoped, tag = 'scoped memory for tpu_custom_call.1']
    #allocation7 [shape = 'u8[32768]{0}', space=vmem, size = 0x8000, scoped, tag = 'input window, operand 2, single buffered']
    #allocation8 [shape = 'u8[32768]{0}', space=vmem, size = 0x8000, scoped, tag = 'input window, operand 3, single buffered']
    #allocation9 [shape = 's32[1]{0}', space=sflag, size = 0x4, scoped, tag = 'scoped memory for tpu_custom_call.1']
    #allocation10 [shape = 'u8[32768]{0}', space=vmem, size = 0x8000, scoped, tag = 'input window, operand 5, single buffered']
    #allocation11 [shape = 'u8[32768]{0}', space=vmem, size = 0x8000, scoped, tag = 'input window, operand 7, single buffered']
    #allocation12 [shape = 's32[1]{0}', space=sflag, size = 0x4, scoped, tag = 'scoped memory for tpu_custom_call.1']
    #allocation13 [shape = 'u8[32768]{0}', space=vmem, size = 0x8000, scoped, tag = 'input window, operand 9, single buffered']
    #allocation14 [shape = 'u8[4096]{0}', space=vmem, size = 0x1000, scoped, tag = 'output window, operand 0, single buffered']
    #allocation15 [shape = 'u8[4096]{0}', space=vmem, size = 0x1000, scoped, tag = 'output window, operand 1, single buffered']
    #allocation16 [shape = 's32[1]{0}', space=sflag, size = 0x4, scoped, tag = 'scoped memory for tpu_custom_call.1']
    %18 = vsyncpa [#allocation3], 0
    %19 = vsyncpa [#allocation6], 0
    %20 = vsyncpa [#allocation9], 0
    %21 = vsyncpa [#allocation12], 0
    %22 = vsyncpa [#allocation4], 0
    %23 = vsyncpa [#allocation16], 0
    // Predicated region
    $region2: #{tpu_custom_call.1} parent=1 // pred_check
      _
    $region3: #{tpu_custom_call.1} parent=1 // pred_check_branch
      %25 = sbr.rel (0) target = $region5
    $region4: #{tpu_custom_call.1} parent=1 // pred_region
      %s27 = ssub.s32 64, 64
      %28 = vsyncadd [#allocation3], %s27
      %s30 = sshll.u32 [#allocation2], 4
      %s31 = int_to_ptr.vmem [resolvable:$true] %s30
      %33 = dma.hbm_to_vmem [thread:$0]  %s0, 64, %s31, [#allocation3]
    $region5: #{tpu_custom_call.1} parent=1 // pred_fallthru
      _
    // Predicated region
    $region6: #{tpu_custom_call.1} parent=1 // pred_check
      _
    $region7: #{tpu_custom_call.1} parent=1 // pred_check_branch
      %35 = sbr.rel (0) target = $region9
    $region8: #{tpu_custom_call.1} parent=1 // pred_region
      %s37 = ssub.s32 64, 64
      %38 = vsyncadd [#allocation6], %s37
      %s40 = sshll.u32 [#allocation5], 4
      %s41 = int_to_ptr.vmem [resolvable:$true] %s40
      %43 = dma.hbm_to_vmem [thread:$0]  %s1, 64, %s41, [#allocation6]
    $region9: #{tpu_custom_call.1} parent=1 // pred_fallthru
      _
    // Predicated region
    $region10: #{tpu_custom_call.1} parent=1 // pred_check
      _
    $region11: #{tpu_custom_call.1} parent=1 // pred_check_branch
      %45 = sbr.rel (0) target = $region13
    $region12: #{tpu_custom_call.1} parent=1 // pred_region
      %s47 = ssub.s32 1024, 1024
      %48 = vsyncadd [#allocation6], %s47
      %s49 = sshll.u32 [#allocation7], 4
      %s50 = int_to_ptr.vmem [resolvable:$true] %s49
      %55 = dma.hbm_to_vmem [thread:$0]  %s2, 1024, %s50, [#allocation6], 64, 64, 4
    $region13: #{tpu_custom_call.1} parent=1 // pred_fallthru
      _
    // Predicated region
    $region14: #{tpu_custom_call.1} parent=1 // pred_check
      _
    $region15: #{tpu_custom_call.1} parent=1 // pred_check_branch
      %57 = sbr.rel (0) target = $region17
    $region16: #{tpu_custom_call.1} parent=1 // pred_region
      %s59 = ssub.s32 1024, 1024
      %60 = vsyncadd [#allocation9], %s59
      %s61 = sshll.u32 [#allocation8], 4
      %s62 = int_to_ptr.vmem [resolvable:$true] %s61
      %67 = dma.hbm_to_vmem [thread:$0]  %s3, 1024, %s62, [#allocation9], 64, 64, 4
    $region17: #{tpu_custom_call.1} parent=1 // pred_fallthru
      _
    // Predicated region
    $region18: #{tpu_custom_call.1} parent=1 // pred_check
      _
    $region19: #{tpu_custom_call.1} parent=1 // pred_check_branch
      %69 = sbr.rel (0) target = $region21
    $region20: #{tpu_custom_call.1} parent=1 // pred_region
      _
    $region21: #{tpu_custom_call.1} parent=1 // pred_fallthru
      _
    // Predicated region
    $region22: #{tpu_custom_call.1} parent=1 // pred_check
      _
    $region23: #{tpu_custom_call.1} parent=1 // pred_check_branch
      %71 = sbr.rel (0) target = $region25
    $region24: #{tpu_custom_call.1} parent=1 // pred_region
      %s73 = ssub.s32 1024, 1024
      %74 = vsyncadd [#allocation9], %s73
      %s75 = sshll.u32 [#allocation10], 4
      %s76 = int_to_ptr.vmem [resolvable:$true] %s75
      %81 = dma.hbm_to_vmem [thread:$0]  %s5, 1024, %s76, [#allocation9], 64, 64, 4
    $region25: #{tpu_custom_call.1} parent=1 // pred_fallthru
      _
    // Predicated region
    $region26: #{tpu_custom_call.1} parent=1 // pred_check
      _
    $region27: #{tpu_custom_call.1} parent=1 // pred_check_branch
      %83 = sbr.rel (0) target = $region29
    $region28: #{tpu_custom_call.1} parent=1 // pred_region
      _
    $region29: #{tpu_custom_call.1} parent=1 // pred_fallthru
      _
    // Predicated region
    $region30: #{tpu_custom_call.1} parent=1 // pred_check
      _
    $region31: #{tpu_custom_call.1} parent=1 // pred_check_branch
      %85 = sbr.rel (0) target = $region33
    $region32: #{tpu_custom_call.1} parent=1 // pred_region
      %s87 = ssub.s32 1024, 1024
      %88 = vsyncadd [#allocation12], %s87
      %s89 = sshll.u32 [#allocation11], 4
      %s90 = int_to_ptr.vmem [resolvable:$true] %s89
      %95 = dma.hbm_to_vmem [thread:$0]  %s7, 1024, %s90, [#allocation12], 64, 64, 4
    $region33: #{tpu_custom_call.1} parent=1 // pred_fallthru
      _
    // Predicated region
    $region34: #{tpu_custom_call.1} parent=1 // pred_check
      _
    $region35: #{tpu_custom_call.1} parent=1 // pred_check_branch
      %97 = sbr.rel (0) target = $region37
    $region36: #{tpu_custom_call.1} parent=1 // pred_region
      _
    $region37: #{tpu_custom_call.1} parent=1 // pred_fallthru
      _
    // Predicated region
    $region38: #{tpu_custom_call.1} parent=1 // pred_check
      _
    $region39: #{tpu_custom_call.1} parent=1 // pred_check_branch
      %99 = sbr.rel (0) target = $region41
    $region40: #{tpu_custom_call.1} parent=1 // pred_region
      %s101 = ssub.s32 1024, 1024
      %102 = vsyncadd [#allocation12], %s101
      %s103 = sshll.u32 [#allocation13], 4
      %s104 = int_to_ptr.vmem [resolvable:$true] %s103
      %109 = dma.hbm_to_vmem [thread:$0]  %s9, 1024, %s104, [#allocation12], 64, 64, 4
    $region41: #{tpu_custom_call.1} parent=1 // pred_fallthru
      _
    // Predicated region
    $region42: #{tpu_custom_call.1} parent=1 // pred_check
      _
    $region43: #{tpu_custom_call.1} parent=1 // pred_check_branch
      %111 = sbr.rel (0) target = $region45
    $region44: #{tpu_custom_call.1} parent=1 // pred_region
      _
    $region45: #{tpu_custom_call.1} parent=1 // pred_fallthru
      _
    // Predicated region
    $region46: #{tpu_custom_call.1} parent=1 // pred_check
      _
    $region47: #{tpu_custom_call.1} parent=1 // pred_check_branch
      %113 = sbr.rel (0) target = $region49
    $region48: #{tpu_custom_call.1} parent=1 // pred_region
      %114 = dma.done [#allocation3], 64
    $region49: #{tpu_custom_call.1} parent=1 // pred_fallthru
      _
    // Predicated region
    $region50: #{tpu_custom_call.1} parent=1 // pred_check
      _
    $region51: #{tpu_custom_call.1} parent=1 // pred_check_branch
      %116 = sbr.rel (0) target = $region53
    $region52: #{tpu_custom_call.1} parent=1 // pred_region
      %117 = dma.done [#allocation6], 64
    $region53: #{tpu_custom_call.1} parent=1 // pred_fallthru
      _
    // Predicated region
    $region54: #{tpu_custom_call.1} parent=1 // pred_check
      _
    $region55: #{tpu_custom_call.1} parent=1 // pred_check_branch
      %119 = sbr.rel (0) target = $region57
    $region56: #{tpu_custom_call.1} parent=1 // pred_region
      %120 = dma.done [#allocation6], 1024
    $region57: #{tpu_custom_call.1} parent=1 // pred_fallthru
      _
    // Predicated region
    $region58: #{tpu_custom_call.1} parent=1 // pred_check
      _
    $region59: #{tpu_custom_call.1} parent=1 // pred_check_branch
      %122 = sbr.rel (0) target = $region61
    $region60: #{tpu_custom_call.1} parent=1 // pred_region
      %123 = dma.done [#allocation9], 1024
    $region61: #{tpu_custom_call.1} parent=1 // pred_fallthru
      _
    // Predicated region
    $region62: #{tpu_custom_call.1} parent=1 // pred_check
      _
    $region63: #{tpu_custom_call.1} parent=1 // pred_check_branch
      %125 = sbr.rel (0) target = $region65
    $region64: #{tpu_custom_call.1} parent=1 // pred_region
      %126 = dma.done [#allocation9], 1024
    $region65: #{tpu_custom_call.1} parent=1 // pred_fallthru
      _
    // Predicated region
    $region66: #{tpu_custom_call.1} parent=1 // pred_check
      _
    $region67: #{tpu_custom_call.1} parent=1 // pred_check_branch
      %128 = sbr.rel (0) target = $region69
    $region68: #{tpu_custom_call.1} parent=1 // pred_region
      %129 = dma.done [#allocation12], 1024
    $region69: #{tpu_custom_call.1} parent=1 // pred_fallthru
      _
    // Predicated region
    $region70: #{tpu_custom_call.1} parent=1 // pred_check
      _
    $region71: #{tpu_custom_call.1} parent=1 // pred_check_branch
      %131 = sbr.rel (0) target = $region73
    $region72: #{tpu_custom_call.1} parent=1 // pred_region
      %132 = dma.done [#allocation12], 1024
    $region73: #{tpu_custom_call.1} parent=1 // pred_fallthru
      _
    %v134 = vld [vmem:[#allocation2] sm:$0xf]
    %v135 = vld [vmem:[#allocation5] sm:$0xf]
    %v136 = vld [vmem:[#allocation7] sm:$0xf]
    %v137 = vld [vmem:[#allocation7 + $0x4] sm:$0xf]
    %v138 = vld [vmem:[#allocation7 + $0x8] sm:$0xf]
    %v139 = vld [vmem:[#allocation7 + $0xc] sm:$0xf]
    %v140 = vld [vmem:[#allocation7 + $0x10] sm:$0xf]
    %v141 = vld [vmem:[#allocation7 + $0x14] sm:$0xf]
    %v142 = vld [vmem:[#allocation7 + $0x18] sm:$0xf]
    %v143 = vld [vmem:[#allocation7 + $0x1c] sm:$0xf]
    %v144 = vld [vmem:[#allocation7 + $0x20] sm:$0xf]
    %v145 = vld [vmem:[#allocation7 + $0x24] sm:$0xf]
    %v146 = vld [vmem:[#allocation7 + $0x28] sm:$0xf]
    %v147 = vld [vmem:[#allocation7 + $0x2c] sm:$0xf]
    %v148 = vld [vmem:[#allocation7 + $0x30] sm:$0xf]
    %v149 = vld [vmem:[#allocation7 + $0x34] sm:$0xf]
    %v150 = vld [vmem:[#allocation7 + $0x38] sm:$0xf]
    %v151 = vld [vmem:[#allocation7 + $0x3c] sm:$0xf]
    %v152 = vld [vmem:[#allocation8] sm:$0xf]
    %v153 = vld [vmem:[#allocation8 + $0x4] sm:$0xf]
    %v154 = vld [vmem:[#allocation8 + $0x8] sm:$0xf]
    %v155 = vld [vmem:[#allocation8 + $0xc] sm:$0xf]
    %v156 = vld [vmem:[#allocation8 + $0x10] sm:$0xf]
    %v157 = vld [vmem:[#allocation8 + $0x14] sm:$0xf]
    %v158 = vld [vmem:[#allocation8 + $0x18] sm:$0xf]
    %v159 = vld [vmem:[#allocation8 + $0x1c] sm:$0xf]
    %v160 = vld [vmem:[#allocation8 + $0x20] sm:$0xf]
    %v161 = vld [vmem:[#allocation8 + $0x24] sm:$0xf]
    %v162 = vld [vmem:[#allocation8 + $0x28] sm:$0xf]
    %v163 = vld [vmem:[#allocation8 + $0x2c] sm:$0xf]
    %v164 = vld [vmem:[#allocation8 + $0x30] sm:$0xf]
    %v165 = vld [vmem:[#allocation8 + $0x34] sm:$0xf]
    %v166 = vld [vmem:[#allocation8 + $0x38] sm:$0xf]
    %v167 = vld [vmem:[#allocation8 + $0x3c] sm:$0xf]
    %v168 = vld [vmem:[%s4] sm:$0x1]
    %v185 = vunpack.c.l.b16 %v152
    %v186 = vunpack.c.l.b16 %v153
    %v187 = vunpack.c.l.b16 %v154
    %v188 = vunpack.c.l.b16 %v155
    %v189 = vunpack.c.l.b16 %v156
    %v190 = vunpack.c.l.b16 %v157
    %v191 = vunpack.c.l.b16 %v158
    %v192 = vunpack.c.l.b16 %v159
    %v193 = vunpack.c.l.b16 %v160
    %v194 = vunpack.c.l.b16 %v161
    %v195 = vunpack.c.l.b16 %v162
    %v196 = vunpack.c.l.b16 %v163
    %v197 = vunpack.c.l.b16 %v164
    %v198 = vunpack.c.l.b16 %v165
    %v199 = vunpack.c.l.b16 %v166
    %v200 = vunpack.c.l.b16 %v167
    %v201 = vpack.c.b16 %v186, %v185
    %v202 = vpack.c.b16 %v188, %v187
    %v203 = vpack.c.b16 %v190, %v189
    %v204 = vpack.c.b16 %v192, %v191
    %v205 = vpack.c.b16 %v194, %v193
    %v206 = vpack.c.b16 %v196, %v195
    %v207 = vpack.c.b16 %v198, %v197
    %v208 = vpack.c.b16 %v200, %v199
    %217 = vmatprep.subr.bf16.mxu0 0
    %218 = vmatpush1.bf16.msra.mxu0 %v201
    %219 = vmatprep.subr.bf16.mxu0 0
    %220 = vmatpush1.bf16.msra.mxu0 %v202
    %221 = vmatprep.subr.bf16.mxu0 0
    %222 = vmatpush1.bf16.msra.mxu0 %v203
    %223 = vmatprep.subr.bf16.mxu0 0
    %224 = vmatpush1.bf16.msra.mxu0 %v204
    %225 = vmatprep.subr.bf16.mxu0 0
    %226 = vmatpush1.bf16.msra.mxu0 %v205
    %227 = vmatprep.subr.bf16.mxu0 0
    %228 = vmatpush1.bf16.msra.mxu0 %v206
    %229 = vmatprep.subr.bf16.mxu0 0
    %230 = vmatpush1.bf16.msra.mxu0 %v207
    %231 = vmatprep.subr.bf16.mxu0 0
    %232 = vmatpush1.bf16.msra.mxu0 %v208
    %233 = vmatprep.subr.bf16.mxu0 0
    %234 = vmatpush1.bf16.msra.mxu0 0
    %235 = vmatprep.subr.bf16.mxu0 0
    %236 = vmatpush1.bf16.msra.mxu0 0
    %237 = vmatprep.subr.bf16.mxu0 0
    %238 = vmatpush1.bf16.msra.mxu0 0
    %239 = vmatprep.subr.bf16.mxu0 0
    %240 = vmatpush1.bf16.msra.mxu0 0
    %241 = vmatprep.subr.bf16.mxu0 0
    %242 = vmatpush1.bf16.msra.mxu0 0
    %243 = vmatprep.subr.bf16.mxu0 0
    %244 = vmatpush1.bf16.msra.mxu0 0
    %245 = vmatprep.subr.bf16.mxu0 0
    %246 = vmatpush1.bf16.msra.mxu0 0
    %247 = vmatprep.subr.bf16.mxu0 0
    %248 = vmatpush1.bf16.msra.mxu0 0
    %249 = vmatprep.mubr.bf16.mxu0 0
    %250 = vmatmul.mubr.bf16.gmra.mrb[0].mxu0 %v135
    %v251 = vpop.f32.mrb[0].mxu0
    %v252 = vadd.f32 0.0, %v251
    %v253 = vpop.f32.mrb[0].mxu0
    %v254 = vpop.f32.mrb[0].mxu0
    %v255 = vpop.f32.mrb[0].mxu0
    %256 = vdwg.mxu0
    %v273 = vunpack.c.l.b16 %v136
    %v274 = vunpack.c.l.b16 %v137
    %v275 = vunpack.c.l.b16 %v138
    %v276 = vunpack.c.l.b16 %v139
    %v277 = vunpack.c.l.b16 %v140
    %v278 = vunpack.c.l.b16 %v141
    %v279 = vunpack.c.l.b16 %v142
    %v280 = vunpack.c.l.b16 %v143
    %v281 = vunpack.c.l.b16 %v144
    %v282 = vunpack.c.l.b16 %v145
    %v283 = vunpack.c.l.b16 %v146
    %v284 = vunpack.c.l.b16 %v147
    %v285 = vunpack.c.l.b16 %v148
    %v286 = vunpack.c.l.b16 %v149
    %v287 = vunpack.c.l.b16 %v150
    %v288 = vunpack.c.l.b16 %v151
    %v289 = vpack.c.b16 %v274, %v273
    %v290 = vpack.c.b16 %v276, %v275
    %v291 = vpack.c.b16 %v278, %v277
    %v292 = vpack.c.b16 %v280, %v279
    %v293 = vpack.c.b16 %v282, %v281
    %v294 = vpack.c.b16 %v284, %v283
    %v295 = vpack.c.b16 %v286, %v285
    %v296 = vpack.c.b16 %v288, %v287
    %305 = vmatprep.subr.bf16.mxu0 0
    %306 = vmatpush1.bf16.msra.mxu0 %v289
    %307 = vmatprep.subr.bf16.mxu0 0
    %308 = vmatpush1.bf16.msra.mxu0 %v290
    %309 = vmatprep.subr.bf16.mxu0 0
    %310 = vmatpush1.bf16.msra.mxu0 %v291
    %311 = vmatprep.subr.bf16.mxu0 0
    %312 = vmatpush1.bf16.msra.mxu0 %v292
    %313 = vmatprep.subr.bf16.mxu0 0
    %314 = vmatpush1.bf16.msra.mxu0 %v293
    %315 = vmatprep.subr.bf16.mxu0 0
    %316 = vmatpush1.bf16.msra.mxu0 %v294
    %317 = vmatprep.subr.bf16.mxu0 0
    %318 = vmatpush1.bf16.msra.mxu0 %v295
    %319 = vmatprep.subr.bf16.mxu0 0
    %320 = vmatpush1.bf16.msra.mxu0 %v296
    %321 = vmatprep.subr.bf16.mxu0 0
    %322 = vmatpush1.bf16.msra.mxu0 0
    %323 = vmatprep.subr.bf16.mxu0 0
    %324 = vmatpush1.bf16.msra.mxu0 0
    %325 = vmatprep.subr.bf16.mxu0 0
    %326 = vmatpush1.bf16.msra.mxu0 0
    %327 = vmatprep.subr.bf16.mxu0 0
    %328 = vmatpush1.bf16.msra.mxu0 0
    %329 = vmatprep.subr.bf16.mxu0 0
    %330 = vmatpush1.bf16.msra.mxu0 0
    %331 = vmatprep.subr.bf16.mxu0 0
    %332 = vmatpush1.bf16.msra.mxu0 0
    %333 = vmatprep.subr.bf16.mxu0 0
    %334 = vmatpush1.bf16.msra.mxu0 0
    %335 = vmatprep.subr.bf16.mxu0 0
    %336 = vmatpush1.bf16.msra.mxu0 0
    %337 = vmatprep.mubr.bf16.mxu0 0
    %338 = vmatmul.mubr.bf16.gmra.mrb[0].mxu0 %v134
    %v339 = vpop.f32.mrb[0].mxu0
    %v340 = vadd.f32 %v252, %v339
    %v341 = vpop.f32.mrb[0].mxu0
    %v342 = vpop.f32.mrb[0].mxu0
    %v343 = vpop.f32.mrb[0].mxu0
    %344 = vdwg.mxu0
    %v346 = vlaneseq
    %v347 = vshrl.u32 %v346, 7
    %v348 = vsub.s32 0, %v347
    %v349 = vrot.slane %v168, %v348
    %v351 = vadd.f32 %v340, %v349
    %v352 = vtanh.pop %v351
    %v353 = vpack.c.bf16 %v352, %v352
    %v354 = vld [vmem:[#allocation10] sm:$0xf]
    %v355 = vld [vmem:[#allocation10 + $0x4] sm:$0xf]
    %v356 = vld [vmem:[#allocation10 + $0x8] sm:$0xf]
    %v357 = vld [vmem:[#allocation10 + $0xc] sm:$0xf]
    %v358 = vld [vmem:[#allocation10 + $0x10] sm:$0xf]
    %v359 = vld [vmem:[#allocation10 + $0x14] sm:$0xf]
    %v360 = vld [vmem:[#allocation10 + $0x18] sm:$0xf]
    %v361 = vld [vmem:[#allocation10 + $0x1c] sm:$0xf]
    %v362 = vld [vmem:[#allocation10 + $0x20] sm:$0xf]
    %v363 = vld [vmem:[#allocation10 + $0x24] sm:$0xf]
    %v364 = vld [vmem:[#allocation10 + $0x28] sm:$0xf]
    %v365 = vld [vmem:[#allocation10 + $0x2c] sm:$0xf]
    %v366 = vld [vmem:[#allocation10 + $0x30] sm:$0xf]
    %v367 = vld [vmem:[#allocation10 + $0x34] sm:$0xf]
    %v368 = vld [vmem:[#allocation10 + $0x38] sm:$0xf]
    %v369 = vld [vmem:[#allocation10 + $0x3c] sm:$0xf]
    %v370 = vld [vmem:[%s6] sm:$0x1]
    %v371 = vld [vmem:[#allocation11] sm:$0xf]
    %v372 = vld [vmem:[#allocation11 + $0x4] sm:$0xf]
    %v373 = vld [vmem:[#allocation11 + $0x8] sm:$0xf]
    %v374 = vld [vmem:[#allocation11 + $0xc] sm:$0xf]
    %v375 = vld [vmem:[#allocation11 + $0x10] sm:$0xf]
    %v376 = vld [vmem:[#allocation11 + $0x14] sm:$0xf]
    %v377 = vld [vmem:[#allocation11 + $0x18] sm:$0xf]
    %v378 = vld [vmem:[#allocation11 + $0x1c] sm:$0xf]
    %v379 = vld [vmem:[#allocation11 + $0x20] sm:$0xf]
    %v380 = vld [vmem:[#allocation11 + $0x24] sm:$0xf]
    %v381 = vld [vmem:[#allocation11 + $0x28] sm:$0xf]
    %v382 = vld [vmem:[#allocation11 + $0x2c] sm:$0xf]
    %v383 = vld [vmem:[#allocation11 + $0x30] sm:$0xf]
    %v384 = vld [vmem:[#allocation11 + $0x34] sm:$0xf]
    %v385 = vld [vmem:[#allocation11 + $0x38] sm:$0xf]
    %v386 = vld [vmem:[#allocation11 + $0x3c] sm:$0xf]
    %v387 = vld [vmem:[%s8] sm:$0x1]
    %v388 = vld [vmem:[#allocation13] sm:$0xf]
    %v389 = vld [vmem:[#allocation13 + $0x4] sm:$0xf]
    %v390 = vld [vmem:[#allocation13 + $0x8] sm:$0xf]
    %v391 = vld [vmem:[#allocation13 + $0xc] sm:$0xf]
    %v392 = vld [vmem:[#allocation13 + $0x10] sm:$0xf]
    %v393 = vld [vmem:[#allocation13 + $0x14] sm:$0xf]
    %v394 = vld [vmem:[#allocation13 + $0x18] sm:$0xf]
    %v395 = vld [vmem:[#allocation13 + $0x1c] sm:$0xf]
    %v396 = vld [vmem:[#allocation13 + $0x20] sm:$0xf]
    %v397 = vld [vmem:[#allocation13 + $0x24] sm:$0xf]
    %v398 = vld [vmem:[#allocation13 + $0x28] sm:$0xf]
    %v399 = vld [vmem:[#allocation13 + $0x2c] sm:$0xf]
    %v400 = vld [vmem:[#allocation13 + $0x30] sm:$0xf]
    %v401 = vld [vmem:[#allocation13 + $0x34] sm:$0xf]
    %v402 = vld [vmem:[#allocation13 + $0x38] sm:$0xf]
    %v403 = vld [vmem:[#allocation13 + $0x3c] sm:$0xf]
    %v404 = vld [vmem:[%s10] sm:$0x1]
    %v406 = vlaneseq
    %v407 = vshrl.u32 %v406, 7
    %v408 = vsub.s32 0, %v407
    %v409 = vrot.slane %v370, %v408
    %v427 = vunpack.c.l.b16 %v354
    %v428 = vunpack.c.l.b16 %v355
    %v429 = vunpack.c.l.b16 %v356
    %v430 = vunpack.c.l.b16 %v357
    %v431 = vunpack.c.l.b16 %v358
    %v432 = vunpack.c.l.b16 %v359
    %v433 = vunpack.c.l.b16 %v360
    %v434 = vunpack.c.l.b16 %v361
    %v435 = vunpack.c.l.b16 %v362
    %v436 = vunpack.c.l.b16 %v363
    %v437 = vunpack.c.l.b16 %v364
    %v438 = vunpack.c.l.b16 %v365
    %v439 = vunpack.c.l.b16 %v366
    %v440 = vunpack.c.l.b16 %v367
    %v441 = vunpack.c.l.b16 %v368
    %v442 = vunpack.c.l.b16 %v369
    %v443 = vpack.c.b16 %v428, %v427
    %v444 = vpack.c.b16 %v430, %v429
    %v445 = vpack.c.b16 %v432, %v431
    %v446 = vpack.c.b16 %v434, %v433
    %v447 = vpack.c.b16 %v436, %v435
    %v448 = vpack.c.b16 %v438, %v437
    %v449 = vpack.c.b16 %v440, %v439
    %v450 = vpack.c.b16 %v442, %v441
    %459 = vmatprep.subr.bf16.mxu0 0
    %460 = vmatpush1.bf16.msra.mxu0 %v443
    %461 = vmatprep.subr.bf16.mxu0 0
    %462 = vmatpush1.bf16.msra.mxu0 %v444
    %463 = vmatprep.subr.bf16.mxu0 0
    %464 = vmatpush1.bf16.msra.mxu0 %v445
    %465 = vmatprep.subr.bf16.mxu0 0
    %466 = vmatpush1.bf16.msra.mxu0 %v446
    %467 = vmatprep.subr.bf16.mxu0 0
    %468 = vmatpush1.bf16.msra.mxu0 %v447
    %469 = vmatprep.subr.bf16.mxu0 0
    %470 = vmatpush1.bf16.msra.mxu0 %v448
    %471 = vmatprep.subr.bf16.mxu0 0
    %472 = vmatpush1.bf16.msra.mxu0 %v449
    %473 = vmatprep.subr.bf16.mxu0 0
    %474 = vmatpush1.bf16.msra.mxu0 %v450
    %475 = vmatprep.subr.bf16.mxu0 0
    %476 = vmatpush1.bf16.msra.mxu0 0
    %477 = vmatprep.subr.bf16.mxu0 0
    %478 = vmatpush1.bf16.msra.mxu0 0
    %479 = vmatprep.subr.bf16.mxu0 0
    %480 = vmatpush1.bf16.msra.mxu0 0
    %481 = vmatprep.subr.bf16.mxu0 0
    %482 = vmatpush1.bf16.msra.mxu0 0
    %483 = vmatprep.subr.bf16.mxu0 0
    %484 = vmatpush1.bf16.msra.mxu0 0
    %485 = vmatprep.subr.bf16.mxu0 0
    %486 = vmatpush1.bf16.msra.mxu0 0
    %487 = vmatprep.subr.bf16.mxu0 0
    %488 = vmatpush1.bf16.msra.mxu0 0
    %489 = vmatprep.subr.bf16.mxu0 0
    %490 = vmatpush1.bf16.msra.mxu0 0
    %491 = vmatprep.mubr.bf16.mxu0 0
    %492 = vmatmul.mubr.bf16.gmra.mrb[0].mxu0 %v353
    %v493 = vpop.f32.mrb[0].mxu0
    %v494 = vadd.f32 %v409, %v493
    %v495 = vpop.f32.mrb[0].mxu0
    %v496 = vpop.f32.mrb[0].mxu0
    %v497 = vpop.f32.mrb[0].mxu0
    %498 = vdwg.mxu0
    %499 = vst [vmem:[#allocation15] sm:$0xff] %v494
    %v501 = vlaneseq
    %v502 = vshrl.u32 %v501, 7
    %v503 = vsub.s32 0, %v502
    %v504 = vrot.slane %v387, %v503
    %v522 = vunpack.c.l.b16 %v371
    %v523 = vunpack.c.l.b16 %v372
    %v524 = vunpack.c.l.b16 %v373
    %v525 = vunpack.c.l.b16 %v374
    %v526 = vunpack.c.l.b16 %v375
    %v527 = vunpack.c.l.b16 %v376
    %v528 = vunpack.c.l.b16 %v377
    %v529 = vunpack.c.l.b16 %v378
    %v530 = vunpack.c.l.b16 %v379
    %v531 = vunpack.c.l.b16 %v380
    %v532 = vunpack.c.l.b16 %v381
    %v533 = vunpack.c.l.b16 %v382
    %v534 = vunpack.c.l.b16 %v383
    %v535 = vunpack.c.l.b16 %v384
    %v536 = vunpack.c.l.b16 %v385
    %v537 = vunpack.c.l.b16 %v386
    %v538 = vpack.c.b16 %v523, %v522
    %v539 = vpack.c.b16 %v525, %v524
    %v540 = vpack.c.b16 %v527, %v526
    %v541 = vpack.c.b16 %v529, %v528
    %v542 = vpack.c.b16 %v531, %v530
    %v543 = vpack.c.b16 %v533, %v532
    %v544 = vpack.c.b16 %v535, %v534
    %v545 = vpack.c.b16 %v537, %v536
    %554 = vmatprep.subr.bf16.mxu0 0
    %555 = vmatpush1.bf16.msra.mxu0 %v538
    %556 = vmatprep.subr.bf16.mxu0 0
    %557 = vmatpush1.bf16.msra.mxu0 %v539
    %558 = vmatprep.subr.bf16.mxu0 0
    %559 = vmatpush1.bf16.msra.mxu0 %v540
    %560 = vmatprep.subr.bf16.mxu0 0
    %561 = vmatpush1.bf16.msra.mxu0 %v541
    %562 = vmatprep.subr.bf16.mxu0 0
    %563 = vmatpush1.bf16.msra.mxu0 %v542
    %564 = vmatprep.subr.bf16.mxu0 0
    %565 = vmatpush1.bf16.msra.mxu0 %v543
    %566 = vmatprep.subr.bf16.mxu0 0
    %567 = vmatpush1.bf16.msra.mxu0 %v544
    %568 = vmatprep.subr.bf16.mxu0 0
    %569 = vmatpush1.bf16.msra.mxu0 %v545
    %570 = vmatprep.subr.bf16.mxu0 0
    %571 = vmatpush1.bf16.msra.mxu0 0
    %572 = vmatprep.subr.bf16.mxu0 0
    %573 = vmatpush1.bf16.msra.mxu0 0
    %574 = vmatprep.subr.bf16.mxu0 0
    %575 = vmatpush1.bf16.msra.mxu0 0
    %576 = vmatprep.subr.bf16.mxu0 0
    %577 = vmatpush1.bf16.msra.mxu0 0
    %578 = vmatprep.subr.bf16.mxu0 0
    %579 = vmatpush1.bf16.msra.mxu0 0
    %580 = vmatprep.subr.bf16.mxu0 0
    %581 = vmatpush1.bf16.msra.mxu0 0
    %582 = vmatprep.subr.bf16.mxu0 0
    %583 = vmatpush1.bf16.msra.mxu0 0
    %584 = vmatprep.subr.bf16.mxu0 0
    %585 = vmatpush1.bf16.msra.mxu0 0
    %586 = vmatprep.mubr.bf16.mxu0 0
    %587 = vmatmul.mubr.bf16.gmra.mrb[0].mxu0 %v135
    %v588 = vpop.f32.mrb[0].mxu0
    %v589 = vadd.f32 %v504, %v588
    %v590 = vpop.f32.mrb[0].mxu0
    %v591 = vpop.f32.mrb[0].mxu0
    %v592 = vpop.f32.mrb[0].mxu0
    %593 = vdwg.mxu0
    %v610 = vunpack.c.l.b16 %v388
    %v611 = vunpack.c.l.b16 %v389
    %v612 = vunpack.c.l.b16 %v390
    %v613 = vunpack.c.l.b16 %v391
    %v614 = vunpack.c.l.b16 %v392
    %v615 = vunpack.c.l.b16 %v393
    %v616 = vunpack.c.l.b16 %v394
    %v617 = vunpack.c.l.b16 %v395
    %v618 = vunpack.c.l.b16 %v396
    %v619 = vunpack.c.l.b16 %v397
    %v620 = vunpack.c.l.b16 %v398
    %v621 = vunpack.c.l.b16 %v399
    %v622 = vunpack.c.l.b16 %v400
    %v623 = vunpack.c.l.b16 %v401
    %v624 = vunpack.c.l.b16 %v402
    %v625 = vunpack.c.l.b16 %v403
    %v626 = vpack.c.b16 %v611, %v610
    %v627 = vpack.c.b16 %v613, %v612
    %v628 = vpack.c.b16 %v615, %v614
    %v629 = vpack.c.b16 %v617, %v616
    %v630 = vpack.c.b16 %v619, %v618
    %v631 = vpack.c.b16 %v621, %v620
    %v632 = vpack.c.b16 %v623, %v622
    %v633 = vpack.c.b16 %v625, %v624
    %642 = vmatprep.subr.bf16.mxu0 0
    %643 = vmatpush1.bf16.msra.mxu0 %v626
    %644 = vmatprep.subr.bf16.mxu0 0
    %645 = vmatpush1.bf16.msra.mxu0 %v627
    %646 = vmatprep.subr.bf16.mxu0 0
    %647 = vmatpush1.bf16.msra.mxu0 %v628
    %648 = vmatprep.subr.bf16.mxu0 0
    %649 = vmatpush1.bf16.msra.mxu0 %v629
    %650 = vmatprep.subr.bf16.mxu0 0
    %651 = vmatpush1.bf16.msra.mxu0 %v630
    %652 = vmatprep.subr.bf16.mxu0 0
    %653 = vmatpush1.bf16.msra.mxu0 %v631
    %654 = vmatprep.subr.bf16.mxu0 0
    %655 = vmatpush1.bf16.msra.mxu0 %v632
    %656 = vmatprep.subr.bf16.mxu0 0
    %657 = vmatpush1.bf16.msra.mxu0 %v633
    %658 = vmatprep.subr.bf16.mxu0 0
    %659 = vmatpush1.bf16.msra.mxu0 0
    %660 = vmatprep.subr.bf16.mxu0 0
    %661 = vmatpush1.bf16.msra.mxu0 0
    %662 = vmatprep.subr.bf16.mxu0 0
    %663 = vmatpush1.bf16.msra.mxu0 0
    %664 = vmatprep.subr.bf16.mxu0 0
    %665 = vmatpush1.bf16.msra.mxu0 0
    %666 = vmatprep.subr.bf16.mxu0 0
    %667 = vmatpush1.bf16.msra.mxu0 0
    %668 = vmatprep.subr.bf16.mxu0 0
    %669 = vmatpush1.bf16.msra.mxu0 0
    %670 = vmatprep.subr.bf16.mxu0 0
    %671 = vmatpush1.bf16.msra.mxu0 0
    %672 = vmatprep.subr.bf16.mxu0 0
    %673 = vmatpush1.bf16.msra.mxu0 0
    %674 = vmatprep.mubr.bf16.mxu0 0
    %675 = vmatmul.mubr.bf16.gmra.mrb[0].mxu0 %v353
    %v676 = vpop.f32.mrb[0].mxu0
    %v677 = vadd.f32 0.0, %v676
    %v678 = vpop.f32.mrb[0].mxu0
    %v679 = vpop.f32.mrb[0].mxu0
    %v680 = vpop.f32.mrb[0].mxu0
    %681 = vdwg.mxu0
    %v682 = vadd.f32 %v589, %v677
    %v684 = vlaneseq
    %v685 = vshrl.u32 %v684, 7
    %v686 = vsub.s32 0, %v685
    %v687 = vrot.slane %v404, %v686
    %v689 = vadd.f32 %v682, %v687
    %690 = vst [vmem:[#allocation14] sm:$0xff] %v689
    // Predicated region
    $region74: #{tpu_custom_call.1} parent=1 // pred_check
      _
    $region75: #{tpu_custom_call.1} parent=1 // pred_check_branch
      %692 = sbr.rel (0) target = $region77
    $region76: #{tpu_custom_call.1} parent=1 // pred_region
      %s694 = ssub.s32 128, 128
      %695 = vsyncadd [#allocation4], %s694
      %s697 = sshll.u32 [#allocation14], 4
      %s698 = int_to_ptr.vmem [resolvable:$true] %s697
      %700 = dma.vmem_to_hbm [thread:$0]  %s698, 128, %s11, [#allocation4]
    $region77: #{tpu_custom_call.1} parent=1 // pred_fallthru
      _
    // Predicated region
    $region78: #{tpu_custom_call.1} parent=1 // pred_check
      _
    $region79: #{tpu_custom_call.1} parent=1 // pred_check_branch
      %702 = sbr.rel (0) target = $region81
    $region80: #{tpu_custom_call.1} parent=1 // pred_region
      %s704 = ssub.s32 128, 128
      %705 = vsyncadd [#allocation16], %s704
      %s707 = sshll.u32 [#allocation15], 4
      %s708 = int_to_ptr.vmem [resolvable:$true] %s707
      %710 = dma.vmem_to_hbm [thread:$0]  %s708, 128, %s12, [#allocation16]
    $region81: #{tpu_custom_call.1} parent=1 // pred_fallthru
      _
    // Predicated region
    $region82: #{tpu_custom_call.1} parent=1 // pred_check
      _
    $region83: #{tpu_custom_call.1} parent=1 // pred_check_branch
      %712 = sbr.rel (0) target = $region85
    $region84: #{tpu_custom_call.1} parent=1 // pred_region
      %713 = dma.done [#allocation4], 128
    $region85: #{tpu_custom_call.1} parent=1 // pred_fallthru
      _
    // Predicated region
    $region86: #{tpu_custom_call.1} parent=1 // pred_check
      _
    $region87: #{tpu_custom_call.1} parent=1 // pred_check_branch
      %715 = sbr.rel (0) target = $region89
    $region88: #{tpu_custom_call.1} parent=1 // pred_region
      %716 = dma.done [#allocation16], 128
    $region89: #{tpu_custom_call.1} parent=1 // pred_fallthru
      _
    %717 = vsyncpa [#allocation3], 1
    %718 = vsyncpa [#allocation6], 1
    %719 = vsyncpa [#allocation9], 1
    %720 = vsyncpa [#allocation12], 1
    %721 = vsyncpa [#allocation4], 1
    %722 = vsyncpa [#allocation16], 1

</llo_original>
